<compile_context>
chip_gen: v7x
topology: tpu7x:2x2x1
jax: 0.10.0
libtpu: 0.0.40
codegen_flags: <defaults>
</compile_context>

<pallas_src>
import functools

import jax
import jax.numpy as jnp
from jax.experimental import pallas as pl
from jax.experimental.pallas import tpu as pltpu

BN_EPS = 1e-5


# --------------------------------------------------------------------------
# Kernels
# --------------------------------------------------------------------------
def _resblock_fused_skip_kernel(x_ref, wcat_ref, bcat_ref, w2_ref, b2_ref, o_ref):
    """Skip is a Linear layer.  wcat = [W1_folded | W_skip], shape (in, 2*F)."""
    # Single lane-dense matmul produces both the main path and the residual.
    hr = jnp.dot(x_ref[...], wcat_ref[...], preferred_element_type=jnp.float32)
    hr = hr + bcat_ref[...]                      # f32 bias add on the f32 acc
    half = hr.shape[-1] // 2                     # = padded out_features
    h = jnp.maximum(hr[:, :half], 0.0)           # relu(bn1(linear1(x)))
    residual = hr[:, half:]                      # skip(x), f32
    # dropout: eval mode -> identity
    h2 = jnp.dot(h.astype(w2_ref.dtype), w2_ref[...],
                 preferred_element_type=jnp.float32) + b2_ref[...]
    o_ref[...] = jnp.maximum(h2 + residual, 0.0).astype(o_ref.dtype)


def _resblock_identity_skip_kernel(x_ref, w1_ref, b1_ref, w2_ref, b2_ref, o_ref):
    """Skip is nn.Identity.  x is streamed in compute dtype (bf16) to halve HBM bytes."""
    x = x_ref[...]                               # compute dtype (bf16)
    h = jnp.dot(x, w1_ref[...], preferred_element_type=jnp.float32) + b1_ref[...]
    h = jnp.maximum(h, 0.0)
    # dropout: eval mode -> identity
    h2 = jnp.dot(h.astype(w2_ref.dtype), w2_ref[...],
                 preferred_element_type=jnp.float32) + b2_ref[...]
    o_ref[...] = jnp.maximum(h2 + x.astype(jnp.float32), 0.0).astype(o_ref.dtype)


# --------------------------------------------------------------------------
# Small host-side helpers
# --------------------------------------------------------------------------
def _cdiv(a, b):
    return -(-a // b)


def _round_up(n, m):
    return ((n + m - 1) // m) * m


def _fold_bn(w, b, g, beta, mean, var):
    """Fold eval-mode BatchNorm into the preceding Linear.

    Returns (in, out) weight and (1, out) bias, both float32.
    """
    scale = g.astype(jnp.float32) / jnp.sqrt(var.astype(jnp.float32) + BN_EPS)
    w_f = w.T.astype(jnp.float32) * scale[None, :]
    b_f = (b.astype(jnp.float32) - mean.astype(jnp.float32)) * scale \
        + beta.astype(jnp.float32)
    return w_f, b_f.reshape(1, -1)


def _pad2(a, rows, cols):
    return jnp.pad(a, ((0, rows - a.shape[0]), (0, cols - a.shape[1])))


@functools.lru_cache(maxsize=1)
def _vmem_budget_bytes():
    """Generation-aware VMEM budget: 3/4 of physical VMEM (headroom for scratch)."""
    cap = 64 * 1024 * 1024                       # conservative default (v7x-sized)
    try:
        info = pltpu.get_tpu_info()
        cap = int(getattr(info, "vmem_capacity_bytes", cap))
    except Exception:
        pass
    return int(cap * 3 // 4)


def _probe_kernel(a_ref, x_ref, o_ref):
    o_ref[...] = x_ref[...] + a_ref[...]


@functools.lru_cache(maxsize=1)
def _single_buffer_weights_ok():
    """Probe (once) whether pipeline_mode=pl.Buffered(1) on a grid-invariant
    input compiles and is numerically correct on this jax/TPU combination."""
    try:
        a = jnp.full((8, 128), 2.0, jnp.float32)
        x = jnp.arange(16 * 128, dtype=jnp.float32).reshape(16, 128)
        out = pl.pallas_call(
            _probe_kernel,
            out_shape=jax.ShapeDtypeStruct((16, 128), jnp.float32),
            grid=(2,),
            in_specs=[
                pl.BlockSpec((8, 128), lambda i: (0, 0),
                             pipeline_mode=pl.Buffered(1)),
                pl.BlockSpec((8, 128), lambda i: (i, 0)),
            ],
            out_specs=pl.BlockSpec((8, 128), lambda i: (i, 0)),
        )(a, x)
        return bool(jnp.allclose(out, x + 2.0))
    except Exception:
        return False


# --------------------------------------------------------------------------
# Forward pass
# --------------------------------------------------------------------------
@functools.partial(
    jax.jit,
    static_argnames=("tile_b_max", "compute_dtype", "out_dtype",
                     "single_buffer_weights", "vmem_budget"))
def _residual_block_forward_impl(x, params, tile_b_max, compute_dtype, out_dtype,
                                 single_buffer_weights, vmem_budget):
    B, in_f = x.shape
    out_f = params["w1"].shape[0]                # torch layout: (out, in)
    identity_skip = params["ws"] is None

    csize = jnp.dtype(compute_dtype).itemsize
    osize = jnp.dtype(out_dtype).itemsize

    # Lane-dense (multiple-of-128) feature dims; matching widths for identity.
    in_f_p = _round_up(in_f, 128)
    out_f_p = _round_up(out_f, 128)
    if identity_skip:
        in_f_p = out_f_p = max(in_f_p, out_f_p)

    # ---- Fold BN (running stats) + bias into the linear weights (host side) ----
    w1f, b1f = _fold_bn(params["w1"], params["b1"], params["g1"],
                        params["be1"], params["m1"], params["v1"])
    w2f, b2f = _fold_bn(params["w2"], params["b2"], params["g2"],
                        params["be2"], params["m2"], params["v2"])
    w2p = _pad2(w2f, out_f_p, out_f_p).astype(compute_dtype)
    b2p = _pad2(b2f, 1, out_f_p)                                       # f32

    if identity_skip:
        w1p = _pad2(w1f, in_f_p, out_f_p).astype(compute_dtype)
        b1p = _pad2(b1f, 1, out_f_p)                                   # f32
        weight_args = (w1p, b1p, w2p, b2p)
        kernel = _resblock_identity_skip_kernel
        mm1_cols = out_f_p
    else:
        wsf = params["ws"].T.astype(jnp.float32)
        bsf = params["bs"].astype(jnp.float32).reshape(1, -1)
        wcat = jnp.concatenate(
            [_pad2(w1f, in_f_p, out_f_p), _pad2(wsf, in_f_p, out_f_p)],
            axis=1).astype(compute_dtype)
        bcat = jnp.concatenate(
            [_pad2(b1f, 1, out_f_p), _pad2(bsf, 1, out_f_p)], axis=1)  # f32
        weight_args = (wcat, bcat, w2p, b2p)
        kernel = _resblock_fused_skip_kernel
        mm1_cols = 2 * out_f_p

    weight_bytes = sum(int(a.size) * a.dtype.itemsize for a in weight_args)
    weight_vmem = weight_bytes * (1 if single_buffer_weights else 2)

    # ---- Batch tile selection: VMEM-budget-derived, 16-aligned, >=2 steps ----
    headroom = 8 << 20
    # Per-row VMEM: double-buffered x + out blocks, plus rough f32 temporaries.
    per_row = 2 * in_f_p * csize + 2 * out_f_p * osize + 16 * out_f_p
    avail = max(vmem_budget - weight_vmem - headroom, per_row * 16)
    tb_vmem = max(16, (avail // per_row // 16) * 16)
    tb_cap = max(16, min(tile_b_max, tb_vmem))
    # >=2 grid steps when B allows (v7x megacore), and last tile nearly full.
    n_steps = max(_cdiv(B, tb_cap), 2 if B >= 32 else 1)
    tb = _round_up(_cdiv(B, n_steps), 16)
    B_p = _round_up(B, tb)
    grid = (B_p // tb,)

    x_p = jnp.pad(x, ((0, B_p - B), (0, in_f_p - in_f))).astype(compute_dtype)

    def wspec(shape):
        # Grid-invariant weights/biases: single-buffer when supported.
        if single_buffer_weights:
            return pl.BlockSpec(shape, lambda i: (0, 0),
                                pipeline_mode=pl.Buffered(1))
        return pl.BlockSpec(shape, lambda i: (0, 0))

    # NOTE: if an xprof trace shows exposed DMA at small feature dims on
    # v5e/v6e, the x/out specs below can be bumped to pl.Buffered(3).
    in_specs = [pl.BlockSpec((tb, in_f_p), lambda i: (i, 0))] + \
               [wspec(a.shape) for a in weight_args]
    out_spec = pl.BlockSpec((tb, out_f_p), lambda i: (i, 0))

    # Explicit, generation-aware VMEM limit (never above the physical budget).
    stream_vmem = 2 * (tb * in_f_p * csize + tb * out_f_p * osize)
    interm_vmem = tb * 16 * out_f_p
    vmem_limit = int(min(weight_vmem + stream_vmem + interm_vmem + headroom,
                         vmem_budget))

    flops = 2 * B_p * in_f_p * mm1_cols + 2 * B_p * out_f_p * out_f_p
    bytes_accessed = (int(x_p.size) * csize + weight_bytes
                      + B_p * out_f_p * osize)
    cost = pl.CostEstimate(flops=int(flops), transcendentals=0,
                           bytes_accessed=int(bytes_accessed))

    out_p = pl.pallas_call(
        kernel,
        out_shape=jax.ShapeDtypeStruct((B_p, out_f_p), out_dtype),
        grid=grid,
        in_specs=in_specs,
        out_specs=out_spec,
        compiler_params=pltpu.CompilerParams(
            dimension_semantics=("parallel",),
            vmem_limit_bytes=vmem_limit),
        cost_estimate=cost,
    )(x_p, *weight_args)

    return out_p[:B, :out_f]


def residual_block_forward(x, params, tile_b_max=1024,
                           compute_dtype=jnp.bfloat16, out_dtype=jnp.float32):
    """x: (B, in_features) float32.  params: dict of torch-layout parameters."""
    return _residual_block_forward_impl(
        x, params,
        tile_b_max=int(tile_b_max),
        compute_dtype=jnp.dtype(compute_dtype),
        out_dtype=jnp.dtype(out_dtype),
        single_buffer_weights=_single_buffer_weights_ok(),
        vmem_budget=_vmem_budget_bytes())


# --------------------------------------------------------------------------
# Synthetic parameters + pure-JAX reference
# --------------------------------------------------------------------------
def init_params(key, in_features, out_features):
    """Deterministic synthetic parameters matching the PyTorch module shapes."""
    ks = jax.random.split(key, 10)
    lim1 = 1.0 / jnp.sqrt(in_features)
    lim2 = 1.0 / jnp.sqrt(out_features)
    u = lambda k, shape, lim: jax.random.uniform(k, shape, jnp.float32, -lim, lim)
    params = {
        "w1": u(ks[0], (out_features, in_features), lim1),
        "b1": u(ks[1], (out_features,), lim1),
        "g1": 1.0 + 0.1 * jax.random.normal(ks[2], (out_features,), jnp.float32),
        "be1": 0.1 * jax.random.normal(ks[3], (out_features,), jnp.float32),
        "m1": 0.05 * jax.random.normal(ks[4], (out_features,), jnp.float32),
        "v1": 1.0 + 0.1 * jax.random.uniform(ks[5], (out_features,), jnp.float32),
        "w2": u(ks[6], (out_features, out_features), lim2),
        "b2": u(ks[7], (out_features,), lim2),
        "g2": 1.0 + 0.1 * jax.random.normal(ks[8], (out_features,), jnp.float32),
        "be2": 0.1 * jax.random.normal(ks[9], (out_features,), jnp.float32),
        "m2": jnp.zeros((out_features,), jnp.float32),
        "v2": jnp.ones((out_features,), jnp.float32),
    }
    if in_features != out_features:
        ks2 = jax.random.split(jax.random.fold_in(key, 123), 2)
        params["ws"] = u(ks2[0], (out_features, in_features), lim1)
        params["bs"] = u(ks2[1], (out_features,), lim1)
    else:
        params["ws"] = None
        params["bs"] = None
    return params


def reference_forward(x, params):
    """Pure-JAX f32 reference of the eval-mode forward pass."""
    def bn(h, g, be, m, v):
        return (h - m) / jnp.sqrt(v + BN_EPS) * g + be

    if params["ws"] is None:
        residual = x
    else:
        residual = x @ params["ws"].T + params["bs"]
    h = x @ params["w1"].T + params["b1"]
    h = jnp.maximum(bn(h, params["g1"], params["be1"], params["m1"], params["v1"]), 0.0)
    h = h @ params["w2"].T + params["b2"]
    h = bn(h, params["g2"], params["be2"], params["m2"], params["v2"])
    return jnp.maximum(h + residual, 0.0)


if __name__ == "__main__":
    key = jax.random.PRNGKey(0)

    # Case 1: in_features != out_features (Linear skip), unaligned B / features.
    B1, IN1, OUT1 = 36, 48, 64
    k1x, k1p = jax.random.split(jax.random.fold_in(key, 1))
    x1 = jax.random.normal(k1x, (B1, IN1), jnp.float32)
    p1 = init_params(k1p, IN1, OUT1)
    out1 = jax.block_until_ready(residual_block_forward(x1, p1))
    ref1 = reference_forward(x1, p1)
    assert out1.shape == ref1.shape == (B1, OUT1)
    assert out1.dtype == jnp.float32
    assert jnp.allclose(out1, ref1, atol=5e-2, rtol=5e-2), "case1 mismatch"

    # Case 2: in_features == out_features (Identity skip).
    B2, F2 = 64, 64
    k2x, k2p = jax.random.split(jax.random.fold_in(key, 2))
    x2 = jax.random.normal(k2x, (B2, F2), jnp.float32)
    p2 = init_params(k2p, F2, F2)
    out2 = jax.block_until_ready(residual_block_forward(x2, p2))
    ref2 = reference_forward(x2, p2)
    assert out2.shape == ref2.shape == (B2, F2)
    assert jnp.allclose(out2, ref2, atol=5e-2, rtol=5e-2), "case2 mismatch"

    # Case 3: bf16-output path (reduced writeback bytes), loose tolerance.
    out3 = jax.block_until_ready(
        residual_block_forward(x2, p2, out_dtype=jnp.bfloat16))
    assert out3.shape == (B2, F2) and out3.dtype == jnp.bfloat16
    assert jnp.allclose(out3.astype(jnp.float32), ref2,
                        atol=1.5e-1, rtol=5e-2), "case3 mismatch"

    print("KERNEL_OK")
</pallas_src>

<mosaic_0001>
module attributes {stable_mosaic.version = 11 : i64} {
  func.func @_probe_kernel(%arg0: i32, %arg1: memref<8x128xf32, #tpu.memory_space<vmem>>, %arg2: memref<8x128xf32, #tpu.memory_space<vmem>>, %arg3: memref<8x128xf32, #tpu.memory_space<vmem>>) attributes {dimension_semantics = [#tpu.dimension_semantics<arbitrary>], iteration_bounds = array<i64: 2>, scalar_prefetch = 0 : i64, scratch_operands = 0 : i64, tpu.core_type = #tpu.core_type<tc>, window_params = [{pipeline_mode = #tpu.pipeline_mode<synchronous>, transform_indices = @transform_0, window_bounds = array<i64: 8, 128>}, {transform_indices = @transform_1, window_bounds = array<i64: 8, 128>}, {transform_indices = @transform_2, window_bounds = array<i64: 8, 128>}]} {
    %c0 = arith.constant 0 : index
    %c0_0 = arith.constant 0 : index
    %0 = vector.load %arg2[%c0, %c0_0] : memref<8x128xf32, #tpu.memory_space<vmem>>, vector<8x128xf32>
    %c0_1 = arith.constant 0 : index
    %c0_2 = arith.constant 0 : index
    %1 = vector.load %arg1[%c0_1, %c0_2] : memref<8x128xf32, #tpu.memory_space<vmem>>, vector<8x128xf32>
    %2 = arith.addf %0, %1 : vector<8x128xf32>
    %c0_3 = arith.constant 0 : index
    %c0_4 = arith.constant 0 : index
    %3 = vector.load %arg3[%c0_3, %c0_4] : memref<8x128xf32, #tpu.memory_space<vmem>>, vector<8x128xf32>
    tpu.vector_store %arg3[%c0_3, %c0_4], %2 {strides = array<i32>} : memref<8x128xf32, #tpu.memory_space<vmem>>, vector<8x128xf32>,
    return
  }
  func.func @transform_0(%arg0: i32) -> (i32, i32) {
    %c0_i32 = arith.constant 0 : i32
    %c0_i32_0 = arith.constant 0 : i32
    %c0_i32_1 = arith.constant 0 : i32
    return %c0_i32, %c0_i32_0 : i32, i32
  }
  func.func @transform_1(%arg0: i32) -> (i32, i32) {
    %c0_i32 = arith.constant 0 : i32
    %c0_i32_0 = arith.constant 0 : i32
    return %arg0, %c0_i32 : i32, i32
  }
  func.func @transform_2(%arg0: i32) -> (i32, i32) {
    %c0_i32 = arith.constant 0 : i32
    %c0_i32_0 = arith.constant 0 : i32
    return %arg0, %c0_i32 : i32, i32
  }
}

module attributes {stable_mosaic.version = 11 : i64} {
  func.func @_resblock_fused_skip_kernel(%arg0: i32, %arg1: memref<32x128xbf16, #tpu.memory_space<vmem>>, %arg2: memref<128x256xbf16, #tpu.memory_space<vmem>>, %arg3: memref<1x256xf32, #tpu.memory_space<vmem>>, %arg4: memref<128x128xbf16, #tpu.memory_space<vmem>>, %arg5: memref<1x128xf32, #tpu.memory_space<vmem>>, %arg6: memref<32x128xf32, #tpu.memory_space<vmem>>) attributes {dimension_semantics = [#tpu.dimension_semantics<parallel>], iteration_bounds = array<i64: 2>, scalar_prefetch = 0 : i64, scratch_operands = 0 : i64, tpu.core_type = #tpu.core_type<tc>, window_params = [{transform_indices = @transform_0, window_bounds = array<i64: 32, 128>}, {pipeline_mode = #tpu.pipeline_mode<synchronous>, transform_indices = @transform_1, window_bounds = array<i64: 128, 256>}, {pipeline_mode = #tpu.pipeline_mode<synchronous>, transform_indices = @transform_2, window_bounds = array<i64: 1, 256>}, {pipeline_mode = #tpu.pipeline_mode<synchronous>, transform_indices = @transform_3, window_bounds = array<i64: 128, 128>}, {pipeline_mode = #tpu.pipeline_mode<synchronous>, transform_indices = @transform_4, window_bounds = array<i64: 1, 128>}, {transform_indices = @transform_5, window_bounds = array<i64: 32, 128>}]} {
    %c0 = arith.constant 0 : index
    %c0_0 = arith.constant 0 : index
    %0 = vector.load %arg1[%c0, %c0_0] : memref<32x128xbf16, #tpu.memory_space<vmem>>, vector<32x128xbf16>
    %c0_1 = arith.constant 0 : index
    %c0_2 = arith.constant 0 : index
    %1 = vector.load %arg2[%c0_1, %c0_2] : memref<128x256xbf16, #tpu.memory_space<vmem>>, vector<128x256xbf16>
    %cst = arith.constant dense<0.000000e+00> : vector<32x256xf32>
    %2 = tpu.matmul %0, %1, %cst {dimension_numbers = #tpu.dot_dimension_numbers<[1], [0], [0], [1], [0, 0, 1, 1], [], []>} : vector<32x128xbf16>, vector<128x256xbf16>, vector<32x256xf32> -> vector<32x256xf32>
    %c0_3 = arith.constant 0 : index
    %c0_4 = arith.constant 0 : index
    %3 = vector.load %arg3[%c0_3, %c0_4] : memref<1x256xf32, #tpu.memory_space<vmem>>, vector<1x256xf32>
    %4 = vector.broadcast %3 : vector<1x256xf32> to vector<32x256xf32>
    %5 = arith.addf %2, %4 : vector<32x256xf32>
    %6 = vector.extract_strided_slice %5 {offsets = [0, 0], sizes = [32, 128], strides = [1, 1]} : vector<32x256xf32> to vector<32x128xf32>
    %cst_5 = arith.constant 0.000000e+00 : f32
    %7 = vector.broadcast %cst_5 : f32 to vector<32x128xf32>
    %8 = arith.maximumf %6, %7 : vector<32x128xf32>
    %9 = vector.extract_strided_slice %5 {offsets = [0, 128], sizes = [32, 128], strides = [1, 1]} : vector<32x256xf32> to vector<32x128xf32>
    %10 = arith.truncf %8 : vector<32x128xf32> to vector<32x128xbf16>
    %c0_6 = arith.constant 0 : index
    %c0_7 = arith.constant 0 : index
    %11 = vector.load %arg4[%c0_6, %c0_7] : memref<128x128xbf16, #tpu.memory_space<vmem>>, vector<128x128xbf16>
    %cst_8 = arith.constant dense<0.000000e+00> : vector<32x128xf32>
    %12 = tpu.matmul %10, %11, %cst_8 {dimension_numbers = #tpu.dot_dimension_numbers<[1], [0], [0], [1], [0, 0, 1, 1], [], []>} : vector<32x128xbf16>, vector<128x128xbf16>, vector<32x128xf32> -> vector<32x128xf32>
    %c0_9 = arith.constant 0 : index
    %c0_10 = arith.constant 0 : index
    %13 = vector.load %arg5[%c0_9, %c0_10] : memref<1x128xf32, #tpu.memory_space<vmem>>, vector<1x128xf32>
    %14 = vector.broadcast %13 : vector<1x128xf32> to vector<32x128xf32>
    %15 = arith.addf %12, %14 : vector<32x128xf32>
    %16 = arith.addf %15, %9 : vector<32x128xf32>
    %cst_11 = arith.constant 0.000000e+00 : f32
    %17 = vector.broadcast %cst_11 : f32 to vector<32x128xf32>
    %18 = arith.maximumf %16, %17 : vector<32x128xf32>
    %c0_12 = arith.constant 0 : index
    %c0_13 = arith.constant 0 : index
    %19 = vector.load %arg6[%c0_12, %c0_13] : memref<32x128xf32, #tpu.memory_space<vmem>>, vector<32x128xf32>
    tpu.vector_store %arg6[%c0_12, %c0_13], %18 {strides = array<i32>} : memref<32x128xf32, #tpu.memory_space<vmem>>, vector<32x128xf32>,
    return
  }
  func.func @transform_0(%arg0: i32) -> (i32, i32) {
    %c0_i32 = arith.constant 0 : i32
    %c0_i32_0 = arith.constant 0 : i32
    return %arg0, %c0_i32 : i32, i32
  }
  func.func @transform_1(%arg0: i32) -> (i32, i32) {
    %c0_i32 = arith.constant 0 : i32
    %c0_i32_0 = arith.constant 0 : i32
    %c0_i32_1 = arith.constant 0 : i32
    return %c0_i32, %c0_i32_0 : i32, i32
  }
  func.func @transform_2(%arg0: i32) -> (i32, i32) {
    %c0_i32 = arith.constant 0 : i32
    %c0_i32_0 = arith.constant 0 : i32
    %c0_i32_1 = arith.constant 0 : i32
    return %c0_i32, %c0_i32_0 : i32, i32
  }
  func.func @transform_3(%arg0: i32) -> (i32, i32) {
    %c0_i32 = arith.constant 0 : i32
    %c0_i32_0 = arith.constant 0 : i32
    %c0_i32_1 = arith.constant 0 : i32
    return %c0_i32, %c0_i32_0 : i32, i32
  }
  func.func @transform_4(%arg0: i32) -> (i32, i32) {
    %c0_i32 = arith.constant 0 : i32
    %c0_i32_0 = arith.constant 0 : i32
    %c0_i32_1 = arith.constant 0 : i32
    return %c0_i32, %c0_i32_0 : i32, i32
  }
  func.func @transform_5(%arg0: i32) -> (i32, i32) {
    %c0_i32 = arith.constant 0 : i32
    %c0_i32_0 = arith.constant 0 : i32
    return %arg0, %c0_i32 : i32, i32
  }
}

</mosaic_0001>

<llo_original>
// kernel: tpu_custom_call.1
$region0: #{tpu_custom_call.1}
  #allocation0 [shape = 'u32[]', space=smem, size = 0x4, offset = 0x4, fixed_abs, tag = 'smem constant byte address 0x4 - core index']
  #allocation1 [shape = 'u32[144,128]{1,0:T(1,128)}', space=vmem, size = 0x12000, scoped, tag = 'internal scratch']
  %s0 = inlined_call_operand.hbm [shape: f32[8,128], index: 0, kind: input, shape index: {}]
  %s1 = inlined_call_operand.hbm [shape: f32[16,128], index: 1, kind: input, shape index: {}]
  %s2 = inlined_call_operand.hbm [shape: f32[16,128], index: 2, kind: output, shape index: {}]
  %s3 = sld [smem:[#allocation0]]
  $region49: #{tpu_custom_call.1} parent=0
    _
  %s5 = ssub.s32 1, %s3
  %s6 = scalar_select 0, %s5, %s3
  $region1: #{tpu_custom_call.1} parent=0
    #allocation2 [shape = 'u8[4096]{0}', space=vmem, size = 0x1000, scoped, tag = 'input window, operand 0, single buffered']
    #allocation3 [shape = 's32[2]{0}', space=sflag, size = 0x8, scoped, tag = 'scoped memory for tpu_custom_call.1']
    #allocation4 [shape = 's32[2]{0}', space=sflag, size = 0x8, scoped, tag = 'scoped memory for tpu_custom_call.1']
    #allocation5 [shape = 'u8[8192]{0}', space=vmem, size = 0x2000, scoped, tag = 'input window, operand 1']
    #allocation6 [shape = 's32[2]{0}', space=sflag, size = 0x8, scoped, tag = 'scoped memory for tpu_custom_call.1']
    #allocation7 [shape = 'u8[8192]{0}', space=vmem, size = 0x2000, scoped, tag = 'output window, operand 0']
    %7 = vsyncpa [#allocation3], 0
    %8 = vsyncpa [#allocation6], 0
    %s9 = scalar_lea.sflag [#allocation6], 1
    %10 = vsyncpa %s9, 0
    %11 = vsyncpa [#allocation4], 0
    %s12 = scalar_lea.sflag [#allocation4], 1
    %13 = vsyncpa %s12, 0
    loop: start=0, step=1, limit=4
    $region2: #{tpu_custom_call.1} parent=1 // loop_pre_header
      _
    $region3: #{tpu_custom_call.1} parent=1 // loop_header
      %s15 = sphi 0, %s19
      %p16 = scmp.ge.s32.totalorder %s15, 4
      %s23 = sphi 0, %s23
      %s25 = sphi 0, %s23
      %s26 = sphi 0, %s25
      %s40 = sphi 0, %s26
      %s46 = sphi 0, %s48
      %s49 = sphi 0, %s46
      %s50 = sphi 0, %s49
      %s66 = sphi 0, %s50
      %s72 = sphi 0, %s74
      %s75 = sphi 0, %s72
      %s76 = sphi 0, %s75
      %s92 = sphi 0, %s76
    $region4: #{tpu_custom_call.1} parent=1 // loop_header_branch
      %18 = sbr.rel (%p16) target = $region8
    $region5: #{tpu_custom_call.1} parent=1 // loop_body
      %s20 = ssub.s32 %s15, 1
      %s21 = ssub.s32 %s15, 2
      %s22 = sadd.s32 %s15, 1
      %s24 = sadd.s32 %s23, 1
      %p27 = scmp.eq.s32.totalorder %s15, 1
      %p28 = scmp.ne.s32.totalorder %s23, %s25
      %p29 = scmp.eq.s32.totalorder %s15, 0
      %p30 = por %p28, %p29
      %p31 = scmp.ne.s32.totalorder %s23, %s25
      %p32 = scmp.eq.s32.totalorder %s20, 1
      %p33 = por %p31, %p32
      %p34 = scmp.ne.s32.totalorder %s25, %s26
      %p35 = scmp.eq.s32.totalorder %s20, 0
      %p36 = por %p34, %p35
      %p37 = scmp.ne.s32.totalorder %s25, %s26
      %p38 = scmp.eq.s32.totalorder %s21, 1
      %p39 = por %p37, %p38
      %p41 = scmp.ne.s32.totalorder %s26, %s40
      %p42 = scmp.eq.s32.totalorder %s21, 0
      %p43 = por %p41, %p42
      %s44 = ssub.s32 %s15, %s22
      %p45 = scmp.eq.s32.totalorder %s44, 0
      %s47 = sadd.s32 %s46, 1
      %s48 = scalar_select %p45, %s46, %s47
      %p51 = pneg %p45
      %p52 = scmp.eq.s32.totalorder %s15, 1
      %p53 = por %p51, %p52
      %p54 = scmp.ne.s32.totalorder %s46, %s49
      %p55 = scmp.eq.s32.totalorder %s15, 0
      %p56 = por %p54, %p55
      %p57 = scmp.ne.s32.totalorder %s46, %s49
      %p58 = scmp.eq.s32.totalorder %s20, 1
      %p59 = por %p57, %p58
      %p60 = scmp.ne.s32.totalorder %s49, %s50
      %p61 = scmp.eq.s32.totalorder %s20, 0
      %p62 = por %p60, %p61
      %p63 = scmp.ne.s32.totalorder %s49, %s50
      %p64 = scmp.eq.s32.totalorder %s21, 1
      %p65 = por %p63, %p64
      %p67 = scmp.ne.s32.totalorder %s50, %s66
      %p68 = scmp.eq.s32.totalorder %s21, 0
      %p69 = por %p67, %p68
      %s70 = ssub.s32 %s15, %s22
      %p71 = scmp.eq.s32.totalorder %s70, 0
      %s73 = sadd.s32 %s72, 1
      %s74 = scalar_select %p71, %s72, %s73
      %p77 = pneg %p71
      %p78 = scmp.eq.s32.totalorder %s15, 1
      %p79 = por %p77, %p78
      %p80 = scmp.ne.s32.totalorder %s72, %s75
      %p81 = scmp.eq.s32.totalorder %s15, 0
      %p82 = por %p80, %p81
      %p83 = scmp.ne.s32.totalorder %s72, %s75
      %p84 = scmp.eq.s32.totalorder %s20, 1
      %p85 = por %p83, %p84
      %p86 = scmp.ne.s32.totalorder %s75, %s76
      %p87 = scmp.eq.s32.totalorder %s20, 0
      %p88 = por %p86, %p87
      %p89 = scmp.ne.s32.totalorder %s75, %s76
      %p90 = scmp.eq.s32.totalorder %s21, 1
      %p91 = por %p89, %p90
      %p93 = scmp.ne.s32.totalorder %s76, %s92
      %p94 = scmp.eq.s32.totalorder %s21, 0
      %p95 = por %p93, %p94
      %p96 = scmp.le.s32.totalorder 1, %s15
      %p97 = scmp.lt.s32.totalorder %s15, 3
      %p98 = pnand %p96, %p97
      %p99 = pneg %p98
      // Predicated region
      $region9: #{tpu_custom_call.1} parent=5 // pred_check
        _
      $region10: #{tpu_custom_call.1} parent=5 // pred_check_branch
        %101 = sbr.rel (%p98) target = $region12
      $region11: #{tpu_custom_call.1} parent=5 // pred_region
        %s102 = ssub.s32 %s15, 1
        // Predicated region
        $region13: #{tpu_custom_call.1} parent=11 // pred_check
          %p103 = pneg %p36
        $region14: #{tpu_custom_call.1} parent=11 // pred_check_branch
          %105 = sbr.rel (%p103) target = $region16
        $region15: #{tpu_custom_call.1} parent=11 // pred_region
          %s107 = ssub.s32 128, 128
          %108 = vsyncadd [#allocation3], %s107
          %s110 = sshll.u32 [#allocation2], 4
          %s111 = int_to_ptr.vmem [resolvable:$true] %s110
          %113 = dma.hbm_to_vmem [thread:$0]  %s0, 128, %s111, [#allocation3]
        $region16: #{tpu_custom_call.1} parent=11 // pred_fallthru
          _
      $region12: #{tpu_custom_call.1} parent=5 // pred_fallthru
        _
      %p114 = scmp.lt.s32.totalorder %s15, 2
      // Predicated region
      $region17: #{tpu_custom_call.1} parent=5 // pred_check
        %p115 = pneg %p114
      $region18: #{tpu_custom_call.1} parent=5 // pred_check_branch
        %117 = sbr.rel (%p115) target = $region20
      $region19: #{tpu_custom_call.1} parent=5 // pred_region
        // Predicated region
        $region21: #{tpu_custom_call.1} parent=19 // pred_check
          %p118 = pneg %p56
        $region22: #{tpu_custom_call.1} parent=19 // pred_check_branch
          %120 = sbr.rel (%p118) target = $region24
        $region23: #{tpu_custom_call.1} parent=19 // pred_region
          %s121 = sand.u32 %s46, 1
          %s122 = scalar_lea.sflag [#allocation6], %s121
          %s123 = sand.u32 %s46, 1
          %s124 = smul.addr %s123, 8
          %s125 = scalar_lea.vmem [#allocation5], %s124
          %s127 = ssub.s32 128, 128
          %128 = vsyncadd %s122, %s127
          %s129 = smul.addr %s15, 128
          %s130 = scalar_lea.hbm %s1, %s129
          %s132 = sshll.u32 %s125, 4
          %s133 = int_to_ptr.vmem [resolvable:$true] %s132
          %135 = dma.hbm_to_vmem [thread:$0]  %s130, 128, %s133, %s122
        $region24: #{tpu_custom_call.1} parent=19 // pred_fallthru
          _
      $region20: #{tpu_custom_call.1} parent=5 // pred_fallthru
        _
      %p136 = scmp.le.s32.totalorder 1, %s15
      %p137 = scmp.lt.s32.totalorder %s15, 3
      %p138 = pnand %p136, %p137
      %p139 = pneg %p138
      // Predicated region
      $region25: #{tpu_custom_call.1} parent=5 // pred_check
        _
      $region26: #{tpu_custom_call.1} parent=5 // pred_check_branch
        %141 = sbr.rel (%p138) target = $region28
      $region27: #{tpu_custom_call.1} parent=5 // pred_region
        %s142 = ssub.s32 %s15, 1
        // Predicated region
        $region29: #{tpu_custom_call.1} parent=27 // pred_check
          %p143 = pneg %p36
        $region30: #{tpu_custom_call.1} parent=27 // pred_check_branch
          %145 = sbr.rel (%p143) target = $region32
        $region31: #{tpu_custom_call.1} parent=27 // pred_region
          %146 = dma.done [#allocation3], 128
        $region32: #{tpu_custom_call.1} parent=27 // pred_fallthru
          _
        %s147 = sand.u32 %s49, 1
        %s148 = scalar_lea.sflag [#allocation6], %s147
        %s149 = sand.u32 %s49, 1
        %s150 = smul.addr %s149, 8
        %s151 = scalar_lea.vmem [#allocation5], %s150
        // Predicated region
        $region33: #{tpu_custom_call.1} parent=27 // pred_check
          %p152 = pneg %p62
        $region34: #{tpu_custom_call.1} parent=27 // pred_check_branch
          %154 = sbr.rel (%p152) target = $region36
        $region35: #{tpu_custom_call.1} parent=27 // pred_region
          %155 = dma.done %s148, 128
        $region36: #{tpu_custom_call.1} parent=27 // pred_fallthru
          _
        %p156 = pneg %p36
        %p157 = pneg %p33
        %s158 = sand.u32 %s49, 1
        %s159 = scalar_lea.sflag [#allocation6], %s158
        %s160 = sand.u32 %s49, 1
        %s161 = smul.addr %s160, 8
        %s162 = scalar_lea.vmem [#allocation5], %s161
        %p163 = pneg %p62
        %p164 = pneg %p59
        %p165 = pneg %p88
        %p166 = pneg %p85
        %s167 = sand.u32 %s75, 1
        %s168 = scalar_lea.sflag [#allocation4], %s167
        %s169 = sand.u32 %s75, 1
        %s170 = smul.addr %s169, 8
        %s171 = scalar_lea.vmem [#allocation7], %s170
        %v172 = vld [vmem:[%s151] sm:$0xff]
        %v173 = vld [vmem:[#allocation2] sm:$0xff]
        %v174 = vadd.f32 %v172, %v173
        %175 = vst [vmem:[%s171] sm:$0xff] %v174
        %s176 = sand.u32 %s75, 1
        %s177 = scalar_lea.sflag [#allocation4], %s176
        %s178 = sand.u32 %s75, 1
        %s179 = smul.addr %s178, 8
        %s180 = scalar_lea.vmem [#allocation7], %s179
        // Predicated region
        $region37: #{tpu_custom_call.1} parent=27 // pred_check
          %p181 = pneg %p85
        $region38: #{tpu_custom_call.1} parent=27 // pred_check_branch
          %183 = sbr.rel (%p181) target = $region40
        $region39: #{tpu_custom_call.1} parent=27 // pred_region
          %s185 = ssub.s32 128, 128
          %186 = vsyncadd %s177, %s185
          %s187 = smul.addr %s20, 128
          %s188 = scalar_lea.hbm %s2, %s187
          %s190 = sshll.u32 %s180, 4
          %s191 = int_to_ptr.vmem [resolvable:$true] %s190
          %193 = dma.vmem_to_hbm [thread:$0]  %s191, 128, %s188, %s177
        $region40: #{tpu_custom_call.1} parent=27 // pred_fallthru
          _
      $region28: #{tpu_custom_call.1} parent=5 // pred_fallthru
        _
      %p194 = scmp.le.s32.totalorder 2, %s15
      // Predicated region
      $region41: #{tpu_custom_call.1} parent=5 // pred_check
        %p195 = pneg %p194
      $region42: #{tpu_custom_call.1} parent=5 // pred_check_branch
        %197 = sbr.rel (%p195) target = $region44
      $region43: #{tpu_custom_call.1} parent=5 // pred_region
        %s198 = ssub.s32 %s15, 2
        // Predicated region
        $region45: #{tpu_custom_call.1} parent=43 // pred_check
          %p199 = pneg %p91
        $region46: #{tpu_custom_call.1} parent=43 // pred_check_branch
          %201 = sbr.rel (%p199) target = $region48
        $region47: #{tpu_custom_call.1} parent=43 // pred_region
          %s202 = sand.u32 %s76, 1
          %s203 = scalar_lea.sflag [#allocation4], %s202
          %s204 = sand.u32 %s76, 1
          %s205 = smul.addr %s204, 8
          %s206 = scalar_lea.vmem [#allocation7], %s205
          %207 = dma.done %s203, 128
        $region48: #{tpu_custom_call.1} parent=43 // pred_fallthru
          _
      $region44: #{tpu_custom_call.1} parent=5 // pred_fallthru
        _
    $region6: #{tpu_custom_call.1} parent=1 // loop_footer
      %s19 = sadd.s32 1, %s15
    $region7: #{tpu_custom_call.1} parent=1 // loop_footer_branch
      %14 = sbr.rel target = $region3
    $region8: #{tpu_custom_call.1} parent=1 // loop_exit
      _
    %208 = vsyncpa [#allocation3], 1
    %s209 = scalar_lea.sflag [#allocation3], 1
    %210 = vsyncpa %s209, 1
    %211 = vsyncpa [#allocation6], 1
    %s212 = scalar_lea.sflag [#allocation6], 1
    %213 = vsyncpa %s212, 1
    %214 = vsyncpa [#allocation4], 1
    %s215 = scalar_lea.sflag [#allocation4], 1
    %216 = vsyncpa %s215, 1

// kernel: _residual_block_forward_impl.1
$region0: #{_residual_block_forward_impl.1}
  #allocation0 [shape = 'u32[]', space=smem, size = 0x4, offset = 0x4, fixed_abs, tag = 'smem constant byte address 0x4 - core index']
  #allocation1 [shape = 'u32[144,128]{1,0:T(1,128)}', space=vmem, size = 0x12000, scoped, tag = 'internal scratch']
  %s0 = inlined_call_operand.vmem [shape: bf16[64,128], index: 0, kind: input, shape index: {}]
  %s1 = inlined_call_operand.vmem [shape: bf16[128,256], index: 1, kind: input, shape index: {}]
  %s2 = inlined_call_operand.vmem [shape: f32[1,256], index: 2, kind: input, shape index: {}]
  %s3 = inlined_call_operand.vmem [shape: bf16[128,128], index: 3, kind: input, shape index: {}]
  %s4 = inlined_call_operand.vmem [shape: f32[1,128], index: 4, kind: input, shape index: {}]
  %s5 = inlined_call_operand.vmem [shape: f32[64,128], index: 5, kind: output, shape index: {}]
  %s6 = sld [smem:[#allocation0]]
  $region53: #{_residual_block_forward_impl.1} parent=0
    _
  %s8 = ssub.s32 1, %s6
  %s9 = scalar_select 0, %s8, %s6
  loop: start=0, step=1, limit=4
  $region2: #{_residual_block_forward_impl.1} parent=0 // loop_pre_header
    _
  $region3: #{_residual_block_forward_impl.1} parent=0 // loop_header
    %s11 = sphi 0, %s15
    %p12 = scmp.ge.s32.totalorder %s11, 4
    %s21 = sphi 0, %s23
    %s24 = sphi 0, %s21
    %s25 = sphi 0, %s24
    %s41 = sphi 0, %s25
    %s45 = sphi 0, %s45
    %s47 = sphi 0, %s45
    %s48 = sphi 0, %s47
    %s62 = sphi 0, %s48
    %s66 = sphi 0, %s66
    %s68 = sphi 0, %s66
    %s69 = sphi 0, %s68
    %s83 = sphi 0, %s69
    %s87 = sphi 0, %s87
    %s89 = sphi 0, %s87
    %s90 = sphi 0, %s89
    %s104 = sphi 0, %s90
    %s108 = sphi 0, %s108
    %s110 = sphi 0, %s108
    %s111 = sphi 0, %s110
    %s125 = sphi 0, %s111
    %s131 = sphi 0, %s133
    %s134 = sphi 0, %s131
    %s135 = sphi 0, %s134
    %s151 = sphi 0, %s135
  $region4: #{_residual_block_forward_impl.1} parent=0 // loop_header_branch
    %14 = sbr.rel (%p12) target = $region8
  $region5: #{_residual_block_forward_impl.1} parent=0 // loop_body
    %s16 = ssub.s32 %s11, 1
    %s17 = ssub.s32 %s11, 2
    %s18 = sadd.s32 %s11, 1
    %s19 = ssub.s32 %s11, %s18
    %p20 = scmp.eq.s32.totalorder %s19, 0
    %s22 = sadd.s32 %s21, 1
    %s23 = scalar_select %p20, %s21, %s22
    %p26 = pneg %p20
    %p27 = scmp.eq.s32.totalorder %s11, 1
    %p28 = por %p26, %p27
    %p29 = scmp.ne.s32.totalorder %s21, %s24
    %p30 = scmp.eq.s32.totalorder %s11, 0
    %p31 = por %p29, %p30
    %p32 = scmp.ne.s32.totalorder %s21, %s24
    %p33 = scmp.eq.s32.totalorder %s16, 1
    %p34 = por %p32, %p33
    %p35 = scmp.ne.s32.totalorder %s24, %s25
    %p36 = scmp.eq.s32.totalorder %s16, 0
    %p37 = por %p35, %p36
    %p38 = scmp.ne.s32.totalorder %s24, %s25
    %p39 = scmp.eq.s32.totalorder %s17, 1
    %p40 = por %p38, %p39
    %p42 = scmp.ne.s32.totalorder %s25, %s41
    %p43 = scmp.eq.s32.totalorder %s17, 0
    %p44 = por %p42, %p43
    %s46 = sadd.s32 %s45, 1
    %p49 = scmp.eq.s32.totalorder %s11, 1
    %p50 = scmp.ne.s32.totalorder %s45, %s47
    %p51 = scmp.eq.s32.totalorder %s11, 0
    %p52 = por %p50, %p51
    %p53 = scmp.ne.s32.totalorder %s45, %s47
    %p54 = scmp.eq.s32.totalorder %s16, 1
    %p55 = por %p53, %p54
    %p56 = scmp.ne.s32.totalorder %s47, %s48
    %p57 = scmp.eq.s32.totalorder %s16, 0
    %p58 = por %p56, %p57
    %p59 = scmp.ne.s32.totalorder %s47, %s48
    %p60 = scmp.eq.s32.totalorder %s17, 1
    %p61 = por %p59, %p60
    %p63 = scmp.ne.s32.totalorder %s48, %s62
    %p64 = scmp.eq.s32.totalorder %s17, 0
    %p65 = por %p63, %p64
    %s67 = sadd.s32 %s66, 1
    %p70 = scmp.eq.s32.totalorder %s11, 1
    %p71 = scmp.ne.s32.totalorder %s66, %s68
    %p72 = scmp.eq.s32.totalorder %s11, 0
    %p73 = por %p71, %p72
    %p74 = scmp.ne.s32.totalorder %s66, %s68
    %p75 = scmp.eq.s32.totalorder %s16, 1
    %p76 = por %p74, %p75
    %p77 = scmp.ne.s32.totalorder %s68, %s69
    %p78 = scmp.eq.s32.totalorder %s16, 0
    %p79 = por %p77, %p78
    %p80 = scmp.ne.s32.totalorder %s68, %s69
    %p81 = scmp.eq.s32.totalorder %s17, 1
    %p82 = por %p80, %p81
    %p84 = scmp.ne.s32.totalorder %s69, %s83
    %p85 = scmp.eq.s32.totalorder %s17, 0
    %p86 = por %p84, %p85
    %s88 = sadd.s32 %s87, 1
    %p91 = scmp.eq.s32.totalorder %s11, 1
    %p92 = scmp.ne.s32.totalorder %s87, %s89
    %p93 = scmp.eq.s32.totalorder %s11, 0
    %p94 = por %p92, %p93
    %p95 = scmp.ne.s32.totalorder %s87, %s89
    %p96 = scmp.eq.s32.totalorder %s16, 1
    %p97 = por %p95, %p96
    %p98 = scmp.ne.s32.totalorder %s89, %s90
    %p99 = scmp.eq.s32.totalorder %s16, 0
    %p100 = por %p98, %p99
    %p101 = scmp.ne.s32.totalorder %s89, %s90
    %p102 = scmp.eq.s32.totalorder %s17, 1
    %p103 = por %p101, %p102
    %p105 = scmp.ne.s32.totalorder %s90, %s104
    %p106 = scmp.eq.s32.totalorder %s17, 0
    %p107 = por %p105, %p106
    %s109 = sadd.s32 %s108, 1
    %p112 = scmp.eq.s32.totalorder %s11, 1
    %p113 = scmp.ne.s32.totalorder %s108, %s110
    %p114 = scmp.eq.s32.totalorder %s11, 0
    %p115 = por %p113, %p114
    %p116 = scmp.ne.s32.totalorder %s108, %s110
    %p117 = scmp.eq.s32.totalorder %s16, 1
    %p118 = por %p116, %p117
    %p119 = scmp.ne.s32.totalorder %s110, %s111
    %p120 = scmp.eq.s32.totalorder %s16, 0
    %p121 = por %p119, %p120
    %p122 = scmp.ne.s32.totalorder %s110, %s111
    %p123 = scmp.eq.s32.totalorder %s17, 1
    %p124 = por %p122, %p123
    %p126 = scmp.ne.s32.totalorder %s111, %s125
    %p127 = scmp.eq.s32.totalorder %s17, 0
    %p128 = por %p126, %p127
    %s129 = ssub.s32 %s11, %s18
    %p130 = scmp.eq.s32.totalorder %s129, 0
    %s132 = sadd.s32 %s131, 1
    %s133 = scalar_select %p130, %s131, %s132
    %p136 = pneg %p130
    %p137 = scmp.eq.s32.totalorder %s11, 1
    %p138 = por %p136, %p137
    %p139 = scmp.ne.s32.totalorder %s131, %s134
    %p140 = scmp.eq.s32.totalorder %s11, 0
    %p141 = por %p139, %p140
    %p142 = scmp.ne.s32.totalorder %s131, %s134
    %p143 = scmp.eq.s32.totalorder %s16, 1
    %p144 = por %p142, %p143
    %p145 = scmp.ne.s32.totalorder %s134, %s135
    %p146 = scmp.eq.s32.totalorder %s16, 0
    %p147 = por %p145, %p146
    %p148 = scmp.ne.s32.totalorder %s134, %s135
    %p149 = scmp.eq.s32.totalorder %s17, 1
    %p150 = por %p148, %p149
    %p152 = scmp.ne.s32.totalorder %s135, %s151
    %p153 = scmp.eq.s32.totalorder %s17, 0
    %p154 = por %p152, %p153
    %p155 = scmp.le.s32.totalorder 1, %s11
    %p156 = scmp.lt.s32.totalorder %s11, 3
    %p157 = pnand %p155, %p156
    %p158 = pneg %p157
    // Predicated region
    $region9: #{_residual_block_forward_impl.1} parent=5 // pred_check
      _
    $region10: #{_residual_block_forward_impl.1} parent=5 // pred_check_branch
      %160 = sbr.rel (%p157) target = $region12
    $region11: #{_residual_block_forward_impl.1} parent=5 // pred_region
      %s161 = ssub.s32 %s11, 1
      // Predicated region
      $region13: #{_residual_block_forward_impl.1} parent=11 // pred_check
        %p162 = pneg %p58
      $region14: #{_residual_block_forward_impl.1} parent=11 // pred_check_branch
        %164 = sbr.rel (%p162) target = $region16
      $region15: #{_residual_block_forward_impl.1} parent=11 // pred_region
        _
      $region16: #{_residual_block_forward_impl.1} parent=11 // pred_fallthru
        _
      // Predicated region
      $region17: #{_residual_block_forward_impl.1} parent=11 // pred_check
        %p165 = pneg %p79
      $region18: #{_residual_block_forward_impl.1} parent=11 // pred_check_branch
        %167 = sbr.rel (%p165) target = $region20
      $region19: #{_residual_block_forward_impl.1} parent=11 // pred_region
        _
      $region20: #{_residual_block_forward_impl.1} parent=11 // pred_fallthru
        _
      // Predicated region
      $region21: #{_residual_block_forward_impl.1} parent=11 // pred_check
        %p168 = pneg %p100
      $region22: #{_residual_block_forward_impl.1} parent=11 // pred_check_branch
        %170 = sbr.rel (%p168) target = $region24
      $region23: #{_residual_block_forward_impl.1} parent=11 // pred_region
        _
      $region24: #{_residual_block_forward_impl.1} parent=11 // pred_fallthru
        _
      // Predicated region
      $region25: #{_residual_block_forward_impl.1} parent=11 // pred_check
        %p171 = pneg %p121
      $region26: #{_residual_block_forward_impl.1} parent=11 // pred_check_branch
        %173 = sbr.rel (%p171) target = $region28
      $region27: #{_residual_block_forward_impl.1} parent=11 // pred_region
        _
      $region28: #{_residual_block_forward_impl.1} parent=11 // pred_fallthru
        _
    $region12: #{_residual_block_forward_impl.1} parent=5 // pred_fallthru
      _
    %p174 = scmp.lt.s32.totalorder %s11, 2
    // Predicated region
    $region29: #{_residual_block_forward_impl.1} parent=5 // pred_check
      %p175 = pneg %p174
    $region30: #{_residual_block_forward_impl.1} parent=5 // pred_check_branch
      %177 = sbr.rel (%p175) target = $region32
    $region31: #{_residual_block_forward_impl.1} parent=5 // pred_region
      // Predicated region
      $region33: #{_residual_block_forward_impl.1} parent=31 // pred_check
        %p178 = pneg %p31
      $region34: #{_residual_block_forward_impl.1} parent=31 // pred_check_branch
        %180 = sbr.rel (%p178) target = $region36
      $region35: #{_residual_block_forward_impl.1} parent=31 // pred_region
        %s181 = smul.u32 4, %s11
        %p182 = scmp.lt.s32.totalorder %s181, 7
        %s183 = scalar_select %p182, %s181, 7
        %s184 = smul.addr %s183, 4
        %s185 = scalar_lea.vmem %s0, %s184
        %s186 = smul.u32 4, %s11
      $region36: #{_residual_block_forward_impl.1} parent=31 // pred_fallthru
        _
    $region32: #{_residual_block_forward_impl.1} parent=5 // pred_fallthru
      _
    %p187 = scmp.le.s32.totalorder 1, %s11
    %p188 = scmp.lt.s32.totalorder %s11, 3
    %p189 = pnand %p187, %p188
    %p190 = pneg %p189
    // Predicated region
    $region37: #{_residual_block_forward_impl.1} parent=5 // pred_check
      _
    $region38: #{_residual_block_forward_impl.1} parent=5 // pred_check_branch
      %192 = sbr.rel (%p189) target = $region40
    $region39: #{_residual_block_forward_impl.1} parent=5 // pred_region
      %s193 = ssub.s32 %s11, 1
      %s194 = smul.u32 4, %s16
      %p195 = scmp.lt.s32.totalorder %s194, 7
      %s196 = scalar_select %p195, %s194, 7
      %s197 = smul.addr %s196, 4
      %s198 = scalar_lea.vmem %s0, %s197
      %p199 = pneg %p37
      %p200 = pneg %p34
      %p201 = pneg %p58
      %p202 = pneg %p55
      %p203 = pneg %p79
      %p204 = pneg %p76
      %p205 = pneg %p100
      %p206 = pneg %p97
      %p207 = pneg %p121
      %p208 = pneg %p118
      %p209 = pneg %p147
      %p210 = pneg %p144
      %s211 = smul.u32 4, %s16
      %p212 = scmp.lt.s32.totalorder %s211, 7
      %s213 = scalar_select %p212, %s211, 7
      %s214 = smul.addr %s213, 8
      %s215 = scalar_lea.vmem %s5, %s214
      %s216 = smul.u32 4, %s16
      %p217 = scmp.lt.s32.totalorder %s216, 7
      %s218 = scalar_select %p217, %s216, 7
      %s219 = smul.addr %s218, 4
      %s220 = scalar_lea.vmem %s0, %s219
      %s221 = smul.u32 4, %s16
      %s222 = smul.u32 4, %s16
      %p223 = scmp.lt.s32.totalorder %s222, 7
      %s224 = scalar_select %p223, %s222, 7
      %s225 = smul.addr %s224, 8
      %s226 = scalar_lea.vmem %s5, %s225
      %s227 = smul.u32 4, %s16
      %v229 = vld [vmem:[%s220] sm:$0xf]
      %v230 = vld [vmem:[%s220 + $0x4] sm:$0xf]
      %v231 = vld [vmem:[%s220 + $0x8] sm:$0xf]
      %v232 = vld [vmem:[%s220 + $0xc] sm:$0xf]
      %v233 = vld [vmem:[%s1] sm:$0xff]
      %v234 = vld [vmem:[%s1 + $0x8] sm:$0xff]
      %v235 = vld [vmem:[%s1 + $0x10] sm:$0xff]
      %v236 = vld [vmem:[%s1 + $0x18] sm:$0xff]
      %v237 = vld [vmem:[%s1 + $0x20] sm:$0xff]
      %v238 = vld [vmem:[%s1 + $0x28] sm:$0xff]
      %v239 = vld [vmem:[%s1 + $0x30] sm:$0xff]
      %v240 = vld [vmem:[%s1 + $0x38] sm:$0xff]
      %v241 = vld [vmem:[%s1 + $0x40] sm:$0xff]
      %v242 = vld [vmem:[%s1 + $0x48] sm:$0xff]
      %v243 = vld [vmem:[%s1 + $0x50] sm:$0xff]
      %v244 = vld [vmem:[%s1 + $0x58] sm:$0xff]
      %v245 = vld [vmem:[%s1 + $0x60] sm:$0xff]
      %v246 = vld [vmem:[%s1 + $0x68] sm:$0xff]
      %v247 = vld [vmem:[%s1 + $0x70] sm:$0xff]
      %v248 = vld [vmem:[%s1 + $0x78] sm:$0xff]
      %v249 = vld [vmem:[%s2] sm:$0x3]
      %v251 = vlaneseq
      %v252 = vshrl.u32 %v251, 7
      %v253 = vsub.s32 0, %v252
      %v254 = vrot.slane %v249, %v253
      %v255 = vlaneseq
      %v256 = vshrl.u32 %v255, 7
      %v257 = vsub.s32 1, %v256
      %v258 = vrot.slane %v249, %v257
      %v265 = vunpack.c.l.b16 %v229
      %v266 = vunpack.c.l.b16 %v230
      %v267 = vunpack.c.l.b16 %v231
      %v268 = vunpack.c.l.b16 %v232
      %v269 = vpack.c.b16 %v266, %v265
      %v270 = vpack.c.b16 %v268, %v267
      %v289 = vunpack.c.l.b16 %v233
      %v290 = vunpack.c.h.b16 %v233
      %v291 = vunpack.c.l.b16 %v234
      %v292 = vunpack.c.h.b16 %v234
      %v293 = vunpack.c.l.b16 %v235
      %v294 = vunpack.c.h.b16 %v235
      %v295 = vunpack.c.l.b16 %v236
      %v296 = vunpack.c.h.b16 %v236
      %v297 = vunpack.c.l.b16 %v237
      %v298 = vunpack.c.h.b16 %v237
      %v299 = vunpack.c.l.b16 %v238
      %v300 = vunpack.c.h.b16 %v238
      %v301 = vunpack.c.l.b16 %v239
      %v302 = vunpack.c.h.b16 %v239
      %v303 = vunpack.c.l.b16 %v240
      %v304 = vunpack.c.h.b16 %v240
      %v305 = vunpack.c.l.b16 %v241
      %v306 = vunpack.c.h.b16 %v241
      %v307 = vunpack.c.l.b16 %v242
      %v308 = vunpack.c.h.b16 %v242
      %v309 = vunpack.c.l.b16 %v243
      %v310 = vunpack.c.h.b16 %v243
      %v311 = vunpack.c.l.b16 %v244
      %v312 = vunpack.c.h.b16 %v244
      %v313 = vunpack.c.l.b16 %v245
      %v314 = vunpack.c.h.b16 %v245
      %v315 = vunpack.c.l.b16 %v246
      %v316 = vunpack.c.h.b16 %v246
      %v317 = vunpack.c.l.b16 %v247
      %v318 = vunpack.c.h.b16 %v247
      %v319 = vunpack.c.l.b16 %v248
      %v320 = vunpack.c.h.b16 %v248
      %v321 = vpack.c.b16 %v291, %v289
      %v322 = vpack.c.b16 %v292, %v290
      %v323 = vpack.c.b16 %v295, %v293
      %v324 = vpack.c.b16 %v296, %v294
      %v325 = vpack.c.b16 %v299, %v297
      %v326 = vpack.c.b16 %v300, %v298
      %v327 = vpack.c.b16 %v303, %v301
      %v328 = vpack.c.b16 %v304, %v302
      %v329 = vpack.c.b16 %v307, %v305
      %v330 = vpack.c.b16 %v308, %v306
      %v331 = vpack.c.b16 %v311, %v309
      %v332 = vpack.c.b16 %v312, %v310
      %v333 = vpack.c.b16 %v315, %v313
      %v334 = vpack.c.b16 %v316, %v314
      %v335 = vpack.c.b16 %v319, %v317
      %v336 = vpack.c.b16 %v320, %v318
      %353 = vmatprep.subr.bf16.mxu0 %v322
      %354 = vmatpush1.bf16.msra.mxu0 %v321
      %355 = vmatprep.subr.bf16.mxu0 %v324
      %356 = vmatpush1.bf16.msra.mxu0 %v323
      %357 = vmatprep.subr.bf16.mxu0 %v326
      %358 = vmatpush1.bf16.msra.mxu0 %v325
      %359 = vmatprep.subr.bf16.mxu0 %v328
      %360 = vmatpush1.bf16.msra.mxu0 %v327
      %361 = vmatprep.subr.bf16.mxu0 %v330
      %362 = vmatpush1.bf16.msra.mxu0 %v329
      %363 = vmatprep.subr.bf16.mxu0 %v332
      %364 = vmatpush1.bf16.msra.mxu0 %v331
      %365 = vmatprep.subr.bf16.mxu0 %v334
      %366 = vmatpush1.bf16.msra.mxu0 %v333
      %367 = vmatprep.subr.bf16.mxu0 %v336
      %368 = vmatpush1.bf16.msra.mxu0 %v335
      %369 = vmatprep.subr.bf16.mxu0 0
      %370 = vmatpush1.bf16.msra.mxu0 0
      %371 = vmatprep.subr.bf16.mxu0 0
      %372 = vmatpush1.bf16.msra.mxu0 0
      %373 = vmatprep.subr.bf16.mxu0 0
      %374 = vmatpush1.bf16.msra.mxu0 0
      %375 = vmatprep.subr.bf16.mxu0 0
      %376 = vmatpush1.bf16.msra.mxu0 0
      %377 = vmatprep.subr.bf16.mxu0 0
      %378 = vmatpush1.bf16.msra.mxu0 0
      %379 = vmatprep.subr.bf16.mxu0 0
      %380 = vmatpush1.bf16.msra.mxu0 0
      %381 = vmatprep.subr.bf16.mxu0 0
      %382 = vmatpush1.bf16.msra.mxu0 0
      %383 = vmatprep.subr.bf16.mxu0 0
      %384 = vmatpush1.bf16.msra.mxu0 0
      %385 = vmatprep.mubr.bf16.mxu0 0
      %386 = vmatmul.mubr.bf16.gmra.mrb[0].mxu0 %v269
      %v387 = vpop.f32.mrb[0].mxu0
      %v388 = vadd.f32 %v254, %v387
      %v389 = vpop.f32.mrb[0].mxu0
      %v390 = vadd.f32 %v258, %v389
      %v391 = vpop.f32.mrb[0].mxu0
      %v392 = vadd.f32 %v254, %v391
      %v393 = vpop.f32.mrb[0].mxu0
      %v394 = vadd.f32 %v258, %v393
      %395 = vmatprep.mubr.bf16.mxu0 0
      %396 = vmatmul.mubr.bf16.gmra.mrb[0].mxu0 %v270
      %v397 = vpop.f32.mrb[0].mxu0
      %v398 = vadd.f32 %v254, %v397
      %v399 = vpop.f32.mrb[0].mxu0
      %v400 = vadd.f32 %v258, %v399
      %v401 = vpop.f32.mrb[0].mxu0
      %v402 = vadd.f32 %v254, %v401
      %v403 = vpop.f32.mrb[0].mxu0
      %v404 = vadd.f32 %v258, %v403
      %405 = vdwg.mxu0
      %v406 = vmax.f32 %v388, 0.0
      %v407 = vmax.f32 %v392, 0.0
      %v408 = vmax.f32 %v398, 0.0
      %v409 = vmax.f32 %v402, 0.0
      %v410 = vpack.c.bf16 %v407, %v406
      %v411 = vpack.c.bf16 %v409, %v408
      %v412 = vld [vmem:[%s3] sm:$0xf]
      %v413 = vld [vmem:[%s3 + $0x4] sm:$0xf]
      %v414 = vld [vmem:[%s3 + $0x8] sm:$0xf]
      %v415 = vld [vmem:[%s3 + $0xc] sm:$0xf]
      %v416 = vld [vmem:[%s3 + $0x10] sm:$0xf]
      %v417 = vld [vmem:[%s3 + $0x14] sm:$0xf]
      %v418 = vld [vmem:[%s3 + $0x18] sm:$0xf]
      %v419 = vld [vmem:[%s3 + $0x1c] sm:$0xf]
      %v420 = vld [vmem:[%s3 + $0x20] sm:$0xf]
      %v421 = vld [vmem:[%s3 + $0x24] sm:$0xf]
      %v422 = vld [vmem:[%s3 + $0x28] sm:$0xf]
      %v423 = vld [vmem:[%s3 + $0x2c] sm:$0xf]
      %v424 = vld [vmem:[%s3 + $0x30] sm:$0xf]
      %v425 = vld [vmem:[%s3 + $0x34] sm:$0xf]
      %v426 = vld [vmem:[%s3 + $0x38] sm:$0xf]
      %v427 = vld [vmem:[%s3 + $0x3c] sm:$0xf]
      %v428 = vld [vmem:[%s4] sm:$0x1]
      %v430 = vlaneseq
      %v431 = vshrl.u32 %v430, 7
      %v432 = vsub.s32 0, %v431
      %v433 = vrot.slane %v428, %v432
      %v451 = vunpack.c.l.b16 %v412
      %v452 = vunpack.c.l.b16 %v413
      %v453 = vunpack.c.l.b16 %v414
      %v454 = vunpack.c.l.b16 %v415
      %v455 = vunpack.c.l.b16 %v416
      %v456 = vunpack.c.l.b16 %v417
      %v457 = vunpack.c.l.b16 %v418
      %v458 = vunpack.c.l.b16 %v419
      %v459 = vunpack.c.l.b16 %v420
      %v460 = vunpack.c.l.b16 %v421
      %v461 = vunpack.c.l.b16 %v422
      %v462 = vunpack.c.l.b16 %v423
      %v463 = vunpack.c.l.b16 %v424
      %v464 = vunpack.c.l.b16 %v425
      %v465 = vunpack.c.l.b16 %v426
      %v466 = vunpack.c.l.b16 %v427
      %v467 = vpack.c.b16 %v452, %v451
      %v468 = vpack.c.b16 %v454, %v453
      %v469 = vpack.c.b16 %v456, %v455
      %v470 = vpack.c.b16 %v458, %v457
      %v471 = vpack.c.b16 %v460, %v459
      %v472 = vpack.c.b16 %v462, %v461
      %v473 = vpack.c.b16 %v464, %v463
      %v474 = vpack.c.b16 %v466, %v465
      %483 = vmatprep.subr.bf16.mxu0 0
      %484 = vmatpush1.bf16.msra.mxu0 %v467
      %485 = vmatprep.subr.bf16.mxu0 0
      %486 = vmatpush1.bf16.msra.mxu0 %v468
      %487 = vmatprep.subr.bf16.mxu0 0
      %488 = vmatpush1.bf16.msra.mxu0 %v469
      %489 = vmatprep.subr.bf16.mxu0 0
      %490 = vmatpush1.bf16.msra.mxu0 %v470
      %491 = vmatprep.subr.bf16.mxu0 0
      %492 = vmatpush1.bf16.msra.mxu0 %v471
      %493 = vmatprep.subr.bf16.mxu0 0
      %494 = vmatpush1.bf16.msra.mxu0 %v472
      %495 = vmatprep.subr.bf16.mxu0 0
      %496 = vmatpush1.bf16.msra.mxu0 %v473
      %497 = vmatprep.subr.bf16.mxu0 0
      %498 = vmatpush1.bf16.msra.mxu0 %v474
      %499 = vmatprep.subr.bf16.mxu0 0
      %500 = vmatpush1.bf16.msra.mxu0 0
      %501 = vmatprep.subr.bf16.mxu0 0
      %502 = vmatpush1.bf16.msra.mxu0 0
      %503 = vmatprep.subr.bf16.mxu0 0
      %504 = vmatpush1.bf16.msra.mxu0 0
      %505 = vmatprep.subr.bf16.mxu0 0
      %506 = vmatpush1.bf16.msra.mxu0 0
      %507 = vmatprep.subr.bf16.mxu0 0
      %508 = vmatpush1.bf16.msra.mxu0 0
      %509 = vmatprep.subr.bf16.mxu0 0
      %510 = vmatpush1.bf16.msra.mxu0 0
      %511 = vmatprep.subr.bf16.mxu0 0
      %512 = vmatpush1.bf16.msra.mxu0 0
      %513 = vmatprep.subr.bf16.mxu0 0
      %514 = vmatpush1.bf16.msra.mxu0 0
      %515 = vmatprep.mubr.bf16.mxu0 0
      %516 = vmatmul.mubr.bf16.gmra.mrb[0].mxu0 %v410
      %v517 = vpop.f32.mrb[0].mxu0
      %v518 = vadd.f32 %v433, %v517
      %v519 = vpop.f32.mrb[0].mxu0
      %v520 = vpop.f32.mrb[0].mxu0
      %v521 = vadd.f32 %v433, %v520
      %v522 = vpop.f32.mrb[0].mxu0
      %523 = vmatprep.mubr.bf16.mxu0 0
      %524 = vmatmul.mubr.bf16.gmra.mrb[0].mxu0 %v411
      %v525 = vpop.f32.mrb[0].mxu0
      %v526 = vadd.f32 %v433, %v525
      %v527 = vpop.f32.mrb[0].mxu0
      %v528 = vpop.f32.mrb[0].mxu0
      %v529 = vadd.f32 %v433, %v528
      %v530 = vpop.f32.mrb[0].mxu0
      %531 = vdwg.mxu0
      %v532 = vadd.f32 %v518, %v390
      %v533 = vadd.f32 %v521, %v394
      %v534 = vadd.f32 %v526, %v400
      %v535 = vadd.f32 %v529, %v404
      %v536 = vmax.f32 %v532, 0.0
      %v537 = vmax.f32 %v533, 0.0
      %v538 = vmax.f32 %v534, 0.0
      %v539 = vmax.f32 %v535, 0.0
      %540 = vst [vmem:[%s226] sm:$0xff] %v536
      %541 = vst [vmem:[%s226 + $0x8] sm:$0xff] %v537
      %542 = vst [vmem:[%s226 + $0x10] sm:$0xff] %v538
      %543 = vst [vmem:[%s226 + $0x18] sm:$0xff] %v539
      %s544 = smul.u32 4, %s16
      %p545 = scmp.lt.s32.totalorder %s544, 7
      %s546 = scalar_select %p545, %s544, 7
      %s547 = smul.addr %s546, 8
      %s548 = scalar_lea.vmem %s5, %s547
      // Predicated region
      $region41: #{_residual_block_forward_impl.1} parent=39 // pred_check
        %p549 = pneg %p144
      $region42: #{_residual_block_forward_impl.1} parent=39 // pred_check_branch
        %551 = sbr.rel (%p549) target = $region44
      $region43: #{_residual_block_forward_impl.1} parent=39 // pred_region
        %s552 = smul.u32 4, %s16
      $region44: #{_residual_block_forward_impl.1} parent=39 // pred_fallthru
        _
    $region40: #{_residual_block_forward_impl.1} parent=5 // pred_fallthru
      _
    %p553 = scmp.le.s32.totalorder 2, %s11
    // Predicated region
    $region45: #{_residual_block_forward_impl.1} parent=5 // pred_check
      %p554 = pneg %p553
    $region46: #{_residual_block_forward_impl.1} parent=5 // pred_check_branch
      %556 = sbr.rel (%p554) target = $region48
    $region47: #{_residual_block_forward_impl.1} parent=5 // pred_region
      %s557 = ssub.s32 %s11, 2
      // Predicated region
      $region49: #{_residual_block_forward_impl.1} parent=47 // pred_check
        %p558 = pneg %p150
      $region50: #{_residual_block_forward_impl.1} parent=47 // pred_check_branch
        %560 = sbr.rel (%p558) target = $region52
      $region51: #{_residual_block_forward_impl.1} parent=47 // pred_region
        %s561 = smul.u32 4, %s17
        %p562 = scmp.lt.s32.totalorder %s561, 7
        %s563 = scalar_select %p562, %s561, 7
        %s564 = smul.addr %s563, 8
        %s565 = scalar_lea.vmem %s5, %s564
      $region52: #{_residual_block_forward_impl.1} parent=47 // pred_fallthru
        _
    $region48: #{_residual_block_forward_impl.1} parent=5 // pred_fallthru
      _
  $region6: #{_residual_block_forward_impl.1} parent=0 // loop_footer
    %s15 = sadd.s32 1, %s11
  $region7: #{_residual_block_forward_impl.1} parent=0 // loop_footer_branch
    %10 = sbr.rel target = $region3
  $region8: #{_residual_block_forward_impl.1} parent=0 // loop_exit
    _

</llo_original>
